<compile_context>
chip_gen: v5e
topology: v5e:2x2
jax: 0.10.0
libtpu: 0.0.40
codegen_flags: <defaults>
</compile_context>

<pallas_src>
import functools

import jax
import jax.numpy as jnp
from jax.experimental import pallas as pl
from jax.experimental.pallas import tpu as pltpu

BN_EPS = 1e-5
LANE = 128


def _round_up(n, m):
    return ((n + m - 1) // m) * m


# ----------------------------- Pallas kernel -------------------------------
def _mlp_kernel(n_layers, out_pads, x_ref, *refs):
    """refs = W_0 .. W_{L-1}, bias_pack, o_ref.  BN already folded into W/b."""
    o_ref = refs[-1]
    b_ref = refs[-2]
    w_refs = refs[:-2]

    h = x_ref[...]                                    # (TB, D) f32, no dead cast
    for l in range(n_layers):
        W = w_refs[l][...]                            # (in_pad, out_pad)
        b = b_ref[l:l + 1, :out_pads[l]]              # (1, out_pad) f32, static slice
        # Linear on the MXU: bf16 or f32 operands, f32 accumulation.
        h = jnp.dot(h.astype(W.dtype), W,
                    preferred_element_type=jnp.float32) + b
        if l < n_layers - 1:                          # ReLU on all but output block
            h = jnp.maximum(h, 0.0)
    o_ref[...] = h.astype(o_ref.dtype)


# ----------------------- One-time parameter preparation ---------------------
def prepare_params(params, *, hidden_weight_dtype=jnp.bfloat16):
    """Model-load-time prep (call once, cache the result):
    fold eval-mode BatchNorm into each Linear, zero-pad every out-dim (and the
    following layer's in-dim) to a multiple of 128 lanes, cast hidden-layer
    weights to bf16, and pack all biases into a single (L, max_out) f32 array.
    """
    L = len(params)
    Ws, b_rows, out_pads = [], [], []
    prev_out_pad = None
    for l, p in enumerate(params):
        s = p["gamma"] * jax.lax.rsqrt(p["rv"] + BN_EPS)               # (1, in)
        W = s.reshape(-1, 1) * p["W"]                                   # (in, out)
        b = (p["b"] + (p["beta"] - p["rm"] * s) @ p["W"]).reshape(-1)   # (out,)
        in_dim, out_dim = W.shape
        out_pad = _round_up(out_dim, LANE)
        in_pad = in_dim if l == 0 else prev_out_pad
        Wp = jnp.pad(W, ((0, in_pad - in_dim), (0, out_pad - out_dim)))
        bp = jnp.pad(b, (0, out_pad - out_dim))
        # First & last layer stay f32 (cheap; tightens accuracy of the scalar
        # risk output); hidden layers use bf16 operands, f32 MXU accumulation.
        dt = jnp.float32 if (l == 0 or l == L - 1) else hidden_weight_dtype
        Ws.append(Wp.astype(dt))
        b_rows.append(bp)
        out_pads.append(out_pad)
        prev_out_pad = out_pad

    max_out = max(out_pads)
    bias_pack = jnp.stack(
        [jnp.pad(r, (0, max_out - r.shape[0])) for r in b_rows]
    ).astype(jnp.float32)

    return dict(
        Ws=tuple(Ws),
        bias_pack=bias_pack,
        out_pads=tuple(int(o) for o in out_pads),
        in_dim=int(params[0]["W"].shape[0]),
        out_dim=int(params[-1]["W"].shape[1]),
    )


# ----------------------- Per-generation batch tiling ------------------------
def _choose_batch_tiling(B):
    """Returns (padded_batch, tile_b); tile_b is a multiple of 8 that divides
    the padded batch, sized per TPU generation."""
    B8 = _round_up(max(B, 1), 8)
    try:
        kind = jax.devices()[0].device_kind.lower()
    except Exception:
        kind = ""
    if ("v7" in kind or "7x" in kind) and B8 >= 16:
        target = _round_up(B8 // 2, 8)       # >=2 parallel grid steps -> both TCs
    elif "v6" in kind:
        target = min(B8, 512)                # keep the 256-wide MXU full, fewer steps
    else:
        target = min(B8, 256)                # v5e / default: 128-wide MXU
    tb = min(max(target, 8), B8)
    while B8 % tb:                           # exact divisor, stays a multiple of 8
        tb -= 8
    return B8, tb


# ------------------------------ Forward wrapper ------------------------------
def risk_predictor_forward(x, prepared, *, tile_b=None):
    """x: (B, D) float32.  `prepared` comes from prepare_params() (cached)."""
    Ws = prepared["Ws"]
    bias_pack = prepared["bias_pack"]
    out_pads = prepared["out_pads"]
    out_dim = prepared["out_dim"]
    n_layers = len(Ws)

    B, D = x.shape
    assert D == prepared["in_dim"], (D, prepared["in_dim"])
    n_pad = Ws[-1].shape[1]                  # lane-padded final width (>=128)

    B_pad, tb = _choose_batch_tiling(B)
    if tile_b is not None:
        tb = tile_b
        B_pad = _round_up(B, tb)
    if B_pad != B:                           # sublane/tile alignment; sliced off below
        x = jnp.pad(x, ((0, B_pad - B), (0, 0)))
    grid = (B_pad // tb,)

    # TODO(synk): if D < 128 in production and this sits in a hot loop, pad D
    # (and W0's rows) to 128 in prepare_params for a lane-dense x DMA.
    in_specs = [pl.BlockSpec((tb, D), lambda i: (i, 0))]              # x, batch-tiled
    for W in Ws:                                                      # weights: resident
        in_specs.append(pl.BlockSpec(W.shape, lambda i: (0, 0)))
    in_specs.append(pl.BlockSpec(bias_pack.shape, lambda i: (0, 0)))  # packed biases

    # Advisory cost so XLA schedules surrounding ops around the custom call.
    flops = 2 * B_pad * sum(int(W.shape[0]) * int(W.shape[1]) for W in Ws)
    bytes_accessed = (int(x.size) * x.dtype.itemsize
                      + sum(int(W.size) * W.dtype.itemsize for W in Ws)
                      + int(bias_pack.size) * 4
                      + B_pad * n_pad * 4)
    cost = pl.CostEstimate(flops=flops, transcendentals=0,
                           bytes_accessed=int(bytes_accessed))

    # VMEM: double-buffered x/out tiles + (double-buffered) weights/biases.
    resident = (2 * (tb * D * 4 + tb * n_pad * 4)
                + 2 * sum(int(W.size) * W.dtype.itemsize for W in Ws)
                + 2 * int(bias_pack.size) * 4)
    vmem_limit = int(min(max(2 * resident, 32 << 20), 120 << 20))

    kernel = functools.partial(_mlp_kernel, n_layers, out_pads)

    out_padded = pl.pallas_call(
        kernel,
        out_shape=jax.ShapeDtypeStruct((B_pad, n_pad), jnp.float32),
        grid_spec=pltpu.PrefetchScalarGridSpec(
            num_scalar_prefetch=0,
            grid=grid,
            in_specs=in_specs,
            out_specs=pl.BlockSpec((tb, n_pad), lambda i: (i, 0)),
        ),
        compiler_params=pltpu.CompilerParams(
            dimension_semantics=("parallel",),
            vmem_limit_bytes=vmem_limit,
        ),
        cost_estimate=cost,
    )(x, *Ws, bias_pack)

    return out_padded[:B, :out_dim]          # strip batch/lane padding outside pallas


# --------------------------- Parameter init ---------------------------------
def make_params(key, input_dim, hidden_size, hidden_layers):
    """Builds the feedforward stack: hidden blocks + output block (out_dim=1)."""
    dims = [input_dim] + list(hidden_size[:hidden_layers]) + [1]
    params = []
    gain = jnp.sqrt(2.0)  # nn.init.calculate_gain('relu')
    for l in range(len(dims) - 1):
        fan_in, fan_out = dims[l], dims[l + 1]
        key, kw, kb, kg, kbt, km, kv = jax.random.split(key, 7)
        std = gain * jnp.sqrt(2.0 / (fan_in + fan_out))          # xavier_normal_
        W = std * jax.random.normal(kw, (fan_in, fan_out), jnp.float32)
        bound = 1.0 / jnp.sqrt(fan_in)                           # torch Linear bias init
        b = jax.random.uniform(kb, (1, fan_out), jnp.float32, -bound, bound)
        # BatchNorm1d params (deterministic, non-trivial to exercise the math)
        gamma = 1.0 + 0.1 * jax.random.normal(kg, (1, fan_in), jnp.float32)
        beta = 0.1 * jax.random.normal(kbt, (1, fan_in), jnp.float32)
        rm = 0.1 * jax.random.normal(km, (1, fan_in), jnp.float32)
        rv = 1.0 + 0.1 * jax.random.uniform(kv, (1, fan_in), jnp.float32)
        params.append(dict(gamma=gamma, beta=beta, rm=rm, rv=rv, W=W, b=b))
    return params


# ------------------------------ Reference -----------------------------------
def reference_forward(x, params):
    h = x
    n = len(params)
    for l, p in enumerate(params):
        h = (h - p["rm"]) / jnp.sqrt(p["rv"] + BN_EPS) * p["gamma"] + p["beta"]
        h = h @ p["W"] + p["b"]
        if l < n - 1:
            h = jnp.maximum(h, 0.0)
    return h


# -------------------------------- Main ---------------------------------------
if __name__ == "__main__":
    # Small, module-consistent shapes:
    #   input_dim=16, hidden_size=[32, 32], hidden_layers=2, dropout=0.1
    B, input_dim = 16, 16
    hidden_size = [32, 32]
    hidden_layers = 2

    key = jax.random.PRNGKey(0)
    kx, kp = jax.random.split(key)
    x = jax.random.normal(kx, (B, input_dim), jnp.float32)
    params = make_params(kp, input_dim, hidden_size, hidden_layers)

    # One-time (model-load) preparation; reuse `prepared` for every forward.
    prepared = prepare_params(params)

    out = risk_predictor_forward(x, prepared)
    out = jax.block_until_ready(out)

    ref = reference_forward(x, params)
    assert out.shape == (B, 1), out.shape
    # Only the hidden layer uses bf16 operands (f32 accumulation); first/last
    # layers are f32 -> tolerance tightened vs previous 5e-2.
    assert jnp.allclose(out, ref, atol=2e-2, rtol=2e-2), (
        float(jnp.max(jnp.abs(out - ref)))
    )
    print("KERNEL_OK")
</pallas_src>

<mosaic_0001>
module attributes {stable_mosaic.version = 11 : i64} {
  func.func @_mlp_kernel(%arg0: i32, %arg1: memref<16x16xf32, #tpu.memory_space<vmem>>, %arg2: memref<16x128xf32, #tpu.memory_space<vmem>>, %arg3: memref<128x128xbf16, #tpu.memory_space<vmem>>, %arg4: memref<128x128xf32, #tpu.memory_space<vmem>>, %arg5: memref<3x128xf32, #tpu.memory_space<vmem>>, %arg6: memref<16x128xf32, #tpu.memory_space<vmem>>) attributes {dimension_semantics = [#tpu.dimension_semantics<parallel>], iteration_bounds = array<i64: 1>, scalar_prefetch = 0 : i64, scratch_operands = 0 : i64, tpu.core_type = #tpu.core_type<tc>, window_params = [{transform_indices = @transform_0, window_bounds = array<i64: 16, 16>}, {pipeline_mode = #tpu.pipeline_mode<synchronous>, transform_indices = @transform_1, window_bounds = array<i64: 16, 128>}, {pipeline_mode = #tpu.pipeline_mode<synchronous>, transform_indices = @transform_2, window_bounds = array<i64: 128, 128>}, {pipeline_mode = #tpu.pipeline_mode<synchronous>, transform_indices = @transform_3, window_bounds = array<i64: 128, 128>}, {pipeline_mode = #tpu.pipeline_mode<synchronous>, transform_indices = @transform_4, window_bounds = array<i64: 3, 128>}, {transform_indices = @transform_5, window_bounds = array<i64: 16, 128>}]} {
    %c0 = arith.constant 0 : index
    %c0_0 = arith.constant 0 : index
    %0 = vector.load %arg1[%c0, %c0_0] : memref<16x16xf32, #tpu.memory_space<vmem>>, vector<16x16xf32>
    %c0_1 = arith.constant 0 : index
    %c0_2 = arith.constant 0 : index
    %1 = vector.load %arg2[%c0_1, %c0_2] : memref<16x128xf32, #tpu.memory_space<vmem>>, vector<16x128xf32>
    %c0_3 = arith.constant 0 : index
    %c0_4 = arith.constant 0 : index
    %2 = vector.load %arg5[%c0_3, %c0_4] : memref<3x128xf32, #tpu.memory_space<vmem>>, vector<1x128xf32>
    %cst = arith.constant dense<0.000000e+00> : vector<16x128xf32>
    %3 = tpu.matmul %0, %1, %cst {dimension_numbers = #tpu.dot_dimension_numbers<[1], [0], [0], [1], [0, 0, 1, 1], [], []>} : vector<16x16xf32>, vector<16x128xf32>, vector<16x128xf32> -> vector<16x128xf32>
    %4 = vector.broadcast %2 : vector<1x128xf32> to vector<16x128xf32>
    %5 = arith.addf %3, %4 : vector<16x128xf32>
    %cst_5 = arith.constant 0.000000e+00 : f32
    %6 = vector.broadcast %cst_5 : f32 to vector<16x128xf32>
    %7 = arith.maximumf %5, %6 : vector<16x128xf32>
    %c0_6 = arith.constant 0 : index
    %c0_7 = arith.constant 0 : index
    %8 = vector.load %arg3[%c0_6, %c0_7] : memref<128x128xbf16, #tpu.memory_space<vmem>>, vector<128x128xbf16>
    %c1 = arith.constant 1 : index
    %c0_8 = arith.constant 0 : index
    %9 = vector.load %arg5[%c1, %c0_8] : memref<3x128xf32, #tpu.memory_space<vmem>>, vector<1x128xf32>
    %10 = arith.truncf %7 : vector<16x128xf32> to vector<16x128xbf16>
    %cst_9 = arith.constant dense<0.000000e+00> : vector<16x128xf32>
    %11 = tpu.matmul %10, %8, %cst_9 {dimension_numbers = #tpu.dot_dimension_numbers<[1], [0], [0], [1], [0, 0, 1, 1], [], []>} : vector<16x128xbf16>, vector<128x128xbf16>, vector<16x128xf32> -> vector<16x128xf32>
    %12 = vector.broadcast %9 : vector<1x128xf32> to vector<16x128xf32>
    %13 = arith.addf %11, %12 : vector<16x128xf32>
    %cst_10 = arith.constant 0.000000e+00 : f32
    %14 = vector.broadcast %cst_10 : f32 to vector<16x128xf32>
    %15 = arith.maximumf %13, %14 : vector<16x128xf32>
    %c0_11 = arith.constant 0 : index
    %c0_12 = arith.constant 0 : index
    %16 = vector.load %arg4[%c0_11, %c0_12] : memref<128x128xf32, #tpu.memory_space<vmem>>, vector<128x128xf32>
    %c2 = arith.constant 2 : index
    %c0_13 = arith.constant 0 : index
    %17 = vector.load %arg5[%c2, %c0_13] : memref<3x128xf32, #tpu.memory_space<vmem>>, vector<1x128xf32>
    %cst_14 = arith.constant dense<0.000000e+00> : vector<16x128xf32>
    %18 = tpu.matmul %15, %16, %cst_14 {dimension_numbers = #tpu.dot_dimension_numbers<[1], [0], [0], [1], [0, 0, 1, 1], [], []>} : vector<16x128xf32>, vector<128x128xf32>, vector<16x128xf32> -> vector<16x128xf32>
    %19 = vector.broadcast %17 : vector<1x128xf32> to vector<16x128xf32>
    %20 = arith.addf %18, %19 : vector<16x128xf32>
    %c0_15 = arith.constant 0 : index
    %c0_16 = arith.constant 0 : index
    %21 = vector.load %arg6[%c0_15, %c0_16] : memref<16x128xf32, #tpu.memory_space<vmem>>, vector<16x128xf32>
    tpu.vector_store %arg6[%c0_15, %c0_16], %20 {strides = array<i32>} : memref<16x128xf32, #tpu.memory_space<vmem>>, vector<16x128xf32>,
    return
  }
  func.func @transform_0(%arg0: i32) -> (i32, i32) {
    %c0_i32 = arith.constant 0 : i32
    %c0_i32_0 = arith.constant 0 : i32
    return %arg0, %c0_i32 : i32, i32
  }
  func.func @transform_1(%arg0: i32) -> (i32, i32) {
    %c0_i32 = arith.constant 0 : i32
    %c0_i32_0 = arith.constant 0 : i32
    %c0_i32_1 = arith.constant 0 : i32
    return %c0_i32, %c0_i32_0 : i32, i32
  }
  func.func @transform_2(%arg0: i32) -> (i32, i32) {
    %c0_i32 = arith.constant 0 : i32
    %c0_i32_0 = arith.constant 0 : i32
    %c0_i32_1 = arith.constant 0 : i32
    return %c0_i32, %c0_i32_0 : i32, i32
  }
  func.func @transform_3(%arg0: i32) -> (i32, i32) {
    %c0_i32 = arith.constant 0 : i32
    %c0_i32_0 = arith.constant 0 : i32
    %c0_i32_1 = arith.constant 0 : i32
    return %c0_i32, %c0_i32_0 : i32, i32
  }
  func.func @transform_4(%arg0: i32) -> (i32, i32) {
    %c0_i32 = arith.constant 0 : i32
    %c0_i32_0 = arith.constant 0 : i32
    %c0_i32_1 = arith.constant 0 : i32
    return %c0_i32, %c0_i32_0 : i32, i32
  }
  func.func @transform_5(%arg0: i32) -> (i32, i32) {
    %c0_i32 = arith.constant 0 : i32
    %c0_i32_0 = arith.constant 0 : i32
    return %arg0, %c0_i32 : i32, i32
  }
}

</mosaic_0001>

<llo_original>
// kernel: tpu_custom_call.1
$region0: #{tpu_custom_call.1}
  #allocation0 [shape = 'u32[]', space=smem, size = 0x4, offset = 0x4, fixed_abs, tag = 'smem constant byte address 0x4 - core index']
  #allocation1 [shape = 'u32[72,128]{1,0:T(1,128)}', space=vmem, size = 0x9000, scoped, tag = 'internal scratch']
  %s0 = inlined_call_operand.hbm [shape: f32[16,16], index: 0, kind: input, shape index: {}]
  %s1 = inlined_call_operand.hbm [shape: f32[16,128], index: 1, kind: input, shape index: {}]
  %s2 = inlined_call_operand.hbm [shape: bf16[128,128], index: 2, kind: input, shape index: {}]
  %s3 = inlined_call_operand.hbm [shape: f32[128,128], index: 3, kind: input, shape index: {}]
  %s4 = inlined_call_operand.hbm [shape: f32[3,128], index: 4, kind: input, shape index: {}]
  %s5 = inlined_call_operand.hbm [shape: f32[16,128], index: 5, kind: output, shape index: {}]
  %s6 = sld [smem:[#allocation0]]
  $region50: #{tpu_custom_call.1} parent=0
    _
  %s8 = ssub.s32 1, %s6
  %s9 = scalar_select 0, %s8, %s6
  $region1: #{tpu_custom_call.1} parent=0
    #allocation2 [shape = 'u8[8192]{0}', space=vmem, size = 0x2000, scoped, tag = 'input window, operand 0, single buffered']
    #allocation3 [shape = 's32[1]{0}', space=sflag, size = 0x4, scoped, tag = 'scoped memory for tpu_custom_call.1']
    #allocation4 [shape = 's32[1]{0}', space=sflag, size = 0x4, scoped, tag = 'scoped memory for tpu_custom_call.1']
    #allocation5 [shape = 'u8[8192]{0}', space=vmem, size = 0x2000, scoped, tag = 'input window, operand 1, single buffered']
    #allocation6 [shape = 's32[1]{0}', space=sflag, size = 0x4, scoped, tag = 'scoped memory for tpu_custom_call.1']
    #allocation7 [shape = 'u8[32768]{0}', space=vmem, size = 0x8000, scoped, tag = 'input window, operand 2, single buffered']
    #allocation8 [shape = 'u8[65536]{0}', space=vmem, size = 0x10000, scoped, tag = 'input window, operand 3, single buffered']
    #allocation9 [shape = 's32[1]{0}', space=sflag, size = 0x4, scoped, tag = 'scoped memory for tpu_custom_call.1']
    #allocation10 [shape = 'u8[2048]{0}', space=vmem, size = 0x800, scoped, tag = 'input window, operand 4, single buffered']
    #allocation11 [shape = 'u8[8192]{0}', space=vmem, size = 0x2000, scoped, tag = 'output window, operand 0, single buffered']
    %10 = vsyncpa [#allocation3], 0
    %11 = vsyncpa [#allocation6], 0
    %12 = vsyncpa [#allocation9], 0
    %13 = vsyncpa [#allocation4], 0
    // Predicated region
    $region2: #{tpu_custom_call.1} parent=1 // pred_check
      _
    $region3: #{tpu_custom_call.1} parent=1 // pred_check_branch
      %15 = sbr.rel (0) target = $region5
    $region4: #{tpu_custom_call.1} parent=1 // pred_region
      %17 = vsyncadd [#allocation3], 0
      %s18 = sshll.u32 %s0, 4
      %s19 = int_to_ptr.hbm [resolvable:$true] %s18
      %s20 = sshll.u32 [#allocation2], 4
      %s21 = int_to_ptr.vmem [resolvable:$true] %s20
      %26 = dma.hbm_to_vmem [thread:$0]  %s19, 256, %s21, [#allocation3], 128, 128, 8
    $region5: #{tpu_custom_call.1} parent=1 // pred_fallthru
      _
    // Predicated region
    $region6: #{tpu_custom_call.1} parent=1 // pred_check
      _
    $region7: #{tpu_custom_call.1} parent=1 // pred_check_branch
      %28 = sbr.rel (0) target = $region9
    $region8: #{tpu_custom_call.1} parent=1 // pred_region
      %30 = vsyncadd [#allocation6], 0
      %s31 = sshll.u32 %s1, 4
      %s32 = int_to_ptr.hbm [resolvable:$true] %s31
      %s33 = sshll.u32 [#allocation5], 4
      %s34 = int_to_ptr.vmem [resolvable:$true] %s33
      %39 = dma.hbm_to_vmem [thread:$0]  %s32, 256, %s34, [#allocation6], 128, 128, 8
    $region9: #{tpu_custom_call.1} parent=1 // pred_fallthru
      _
    // Predicated region
    $region10: #{tpu_custom_call.1} parent=1 // pred_check
      _
    $region11: #{tpu_custom_call.1} parent=1 // pred_check_branch
      %41 = sbr.rel (0) target = $region13
    $region12: #{tpu_custom_call.1} parent=1 // pred_region
      %43 = vsyncadd [#allocation6], 0
      %s44 = sshll.u32 %s2, 4
      %s45 = int_to_ptr.hbm [resolvable:$true] %s44
      %s46 = sshll.u32 [#allocation7], 4
      %s47 = int_to_ptr.vmem [resolvable:$true] %s46
      %52 = dma.hbm_to_vmem [thread:$0]  %s45, 1024, %s47, [#allocation6], 64, 64, 4
    $region13: #{tpu_custom_call.1} parent=1 // pred_fallthru
      _
    // Predicated region
    $region14: #{tpu_custom_call.1} parent=1 // pred_check
      _
    $region15: #{tpu_custom_call.1} parent=1 // pred_check_branch
      %54 = sbr.rel (0) target = $region17
    $region16: #{tpu_custom_call.1} parent=1 // pred_region
      %56 = vsyncadd [#allocation9], 0
      %s57 = sshll.u32 %s3, 4
      %s58 = int_to_ptr.hbm [resolvable:$true] %s57
      %s59 = sshll.u32 [#allocation8], 4
      %s60 = int_to_ptr.vmem [resolvable:$true] %s59
      %65 = dma.hbm_to_vmem [thread:$0]  %s58, 2048, %s60, [#allocation9], 128, 128, 8
    $region17: #{tpu_custom_call.1} parent=1 // pred_fallthru
      _
    // Predicated region
    $region18: #{tpu_custom_call.1} parent=1 // pred_check
      _
    $region19: #{tpu_custom_call.1} parent=1 // pred_check_branch
      %67 = sbr.rel (0) target = $region21
    $region20: #{tpu_custom_call.1} parent=1 // pred_region
      %69 = vsyncadd [#allocation9], 0
      %s71 = sshll.u32 %s4, 4
      %s72 = int_to_ptr.hbm [resolvable:$true] %s71
      %s73 = sshll.u32 [#allocation10], 4
      %s74 = int_to_ptr.vmem [resolvable:$true] %s73
      %76 = dma.hbm_to_vmem [thread:$0]  %s72, 64, %s74, [#allocation9]
    $region21: #{tpu_custom_call.1} parent=1 // pred_fallthru
      _
    // Predicated region
    $region22: #{tpu_custom_call.1} parent=1 // pred_check
      _
    $region23: #{tpu_custom_call.1} parent=1 // pred_check_branch
      %78 = sbr.rel (0) target = $region25
    $region24: #{tpu_custom_call.1} parent=1 // pred_region
      %80 = dma.done [#allocation3], 256
    $region25: #{tpu_custom_call.1} parent=1 // pred_fallthru
      _
    // Predicated region
    $region26: #{tpu_custom_call.1} parent=1 // pred_check
      _
    $region27: #{tpu_custom_call.1} parent=1 // pred_check_branch
      %82 = sbr.rel (0) target = $region29
    $region28: #{tpu_custom_call.1} parent=1 // pred_region
      %84 = dma.done [#allocation6], 256
    $region29: #{tpu_custom_call.1} parent=1 // pred_fallthru
      _
    // Predicated region
    $region30: #{tpu_custom_call.1} parent=1 // pred_check
      _
    $region31: #{tpu_custom_call.1} parent=1 // pred_check_branch
      %86 = sbr.rel (0) target = $region33
    $region32: #{tpu_custom_call.1} parent=1 // pred_region
      %88 = dma.done [#allocation6], 1024
    $region33: #{tpu_custom_call.1} parent=1 // pred_fallthru
      _
    // Predicated region
    $region34: #{tpu_custom_call.1} parent=1 // pred_check
      _
    $region35: #{tpu_custom_call.1} parent=1 // pred_check_branch
      %90 = sbr.rel (0) target = $region37
    $region36: #{tpu_custom_call.1} parent=1 // pred_region
      %92 = dma.done [#allocation9], 2048
    $region37: #{tpu_custom_call.1} parent=1 // pred_fallthru
      _
    // Predicated region
    $region38: #{tpu_custom_call.1} parent=1 // pred_check
      _
    $region39: #{tpu_custom_call.1} parent=1 // pred_check_branch
      %94 = sbr.rel (0) target = $region41
    $region40: #{tpu_custom_call.1} parent=1 // pred_region
      %96 = dma.done [#allocation9], 64
    $region41: #{tpu_custom_call.1} parent=1 // pred_fallthru
      _
    %v97 = vld [vmem:[#allocation2] sm:$0xff]
    %v98 = vld [vmem:[#allocation2 + $0x8] sm:$0xff]
    %v99 = vld [vmem:[#allocation5] sm:$0xff]
    %v100 = vld [vmem:[#allocation5 + $0x8] sm:$0xff]
    %v101 = vld [vmem:[#allocation10] sm:$0x1]
    %v102 = vperm.slane %v101, 0
    %vm103 = vcmask 130048
    %v105 = vsel %vm103, %v97, 0
    %v108 = vsel %vm103, %v98, 0
    %110 = vmatpush.msra.mxu0 0.0
    %111 = vmatpush.msra.mxu0 0.0
    %112 = vmatpush.msra.mxu0 0.0
    %113 = vmatpush.msra.mxu0 0.0
    %114 = vmatpush.msra.mxu0 0.0
    %115 = vmatpush.msra.mxu0 0.0
    %116 = vmatpush.msra.mxu0 0.0
    %117 = vmatpush.msra.mxu0 0.0
    %118 = vmatpush.msra.mxu0 0.0
    %119 = vmatpush.msra.mxu0 0.0
    %120 = vmatpush.msra.mxu0 0.0
    %121 = vmatpush.msra.mxu0 0.0
    %122 = vmatpush.msra.mxu0 0.0
    %123 = vmatpush.msra.mxu0 0.0
    %124 = vmatpush.msra.mxu0 %v100
    %125 = vmatpush.msra.mxu0 %v99
    %126 = vmatmul.f32.gmra.mxu0 %v105
    %v127 = vpop.f32.mrf.mxu0
    %v128 = vadd.f32 %v102, %v127
    %129 = vmatmul.f32.gmra.mxu0 %v108
    %v130 = vpop.f32.mrf.mxu0
    %v131 = vadd.f32 %v102, %v130
    %132 = vdwg.mxu0
    %v133 = vmax.f32 %v128, 0.0
    %v134 = vmax.f32 %v131, 0.0
    %v135 = vld [vmem:[#allocation7] sm:$0xf]
    %v136 = vld [vmem:[#allocation7 + $0x4] sm:$0xf]
    %v137 = vld [vmem:[#allocation7 + $0x8] sm:$0xf]
    %v138 = vld [vmem:[#allocation7 + $0xc] sm:$0xf]
    %v139 = vld [vmem:[#allocation7 + $0x10] sm:$0xf]
    %v140 = vld [vmem:[#allocation7 + $0x14] sm:$0xf]
    %v141 = vld [vmem:[#allocation7 + $0x18] sm:$0xf]
    %v142 = vld [vmem:[#allocation7 + $0x1c] sm:$0xf]
    %v143 = vld [vmem:[#allocation7 + $0x20] sm:$0xf]
    %v144 = vld [vmem:[#allocation7 + $0x24] sm:$0xf]
    %v145 = vld [vmem:[#allocation7 + $0x28] sm:$0xf]
    %v146 = vld [vmem:[#allocation7 + $0x2c] sm:$0xf]
    %v147 = vld [vmem:[#allocation7 + $0x30] sm:$0xf]
    %v148 = vld [vmem:[#allocation7 + $0x34] sm:$0xf]
    %v149 = vld [vmem:[#allocation7 + $0x38] sm:$0xf]
    %v150 = vld [vmem:[#allocation7 + $0x3c] sm:$0xf]
    %v151 = vld [vmem:[#allocation10 + $0x1] sm:$0x1]
    %v152 = vpack.c.bf16 %v134, %v133
    %v153 = vperm.slane %v151, 0
    %v170 = vunpack.c.l.b16 %v135
    %v171 = vunpack.c.l.b16 %v136
    %v172 = vunpack.c.l.b16 %v137
    %v173 = vunpack.c.l.b16 %v138
    %v174 = vunpack.c.l.b16 %v139
    %v175 = vunpack.c.l.b16 %v140
    %v176 = vunpack.c.l.b16 %v141
    %v177 = vunpack.c.l.b16 %v142
    %v178 = vunpack.c.l.b16 %v143
    %v179 = vunpack.c.l.b16 %v144
    %v180 = vunpack.c.l.b16 %v145
    %v181 = vunpack.c.l.b16 %v146
    %v182 = vunpack.c.l.b16 %v147
    %v183 = vunpack.c.l.b16 %v148
    %v184 = vunpack.c.l.b16 %v149
    %v185 = vunpack.c.l.b16 %v150
    %v186 = vpack.c.b16 %v171, %v170
    %v187 = vpack.c.b16 %v173, %v172
    %v188 = vpack.c.b16 %v175, %v174
    %v189 = vpack.c.b16 %v177, %v176
    %v190 = vpack.c.b16 %v179, %v178
    %v191 = vpack.c.b16 %v181, %v180
    %v192 = vpack.c.b16 %v183, %v182
    %v193 = vpack.c.b16 %v185, %v184
    %202 = vmatpush.bf16.msra.mxu0 %v193
    %203 = vmatpush.bf16.msra.mxu0 %v192
    %204 = vmatpush.bf16.msra.mxu0 %v191
    %205 = vmatpush.bf16.msra.mxu0 %v190
    %206 = vmatpush.bf16.msra.mxu0 %v189
    %207 = vmatpush.bf16.msra.mxu0 %v188
    %208 = vmatpush.bf16.msra.mxu0 %v187
    %209 = vmatpush.bf16.msra.mxu0 %v186
    %210 = vmatmul.bf16.gmra.mxu0 %v152
    %v211 = vpop.f32.mrf.mxu0
    %v212 = vadd.f32 %v153, %v211
    %v213 = vpop.f32.mrf.mxu0
    %v214 = vadd.f32 %v153, %v213
    %215 = vdwg.mxu0
    %v216 = vmax.f32 %v212, 0.0
    %v217 = vmax.f32 %v214, 0.0
    %v218 = vld [vmem:[#allocation8] sm:$0xff]
    %v219 = vld [vmem:[#allocation8 + $0x8] sm:$0xff]
    %v220 = vld [vmem:[#allocation8 + $0x10] sm:$0xff]
    %v221 = vld [vmem:[#allocation8 + $0x18] sm:$0xff]
    %v222 = vld [vmem:[#allocation8 + $0x20] sm:$0xff]
    %v223 = vld [vmem:[#allocation8 + $0x28] sm:$0xff]
    %v224 = vld [vmem:[#allocation8 + $0x30] sm:$0xff]
    %v225 = vld [vmem:[#allocation8 + $0x38] sm:$0xff]
    %v226 = vld [vmem:[#allocation8 + $0x40] sm:$0xff]
    %v227 = vld [vmem:[#allocation8 + $0x48] sm:$0xff]
    %v228 = vld [vmem:[#allocation8 + $0x50] sm:$0xff]
    %v229 = vld [vmem:[#allocation8 + $0x58] sm:$0xff]
    %v230 = vld [vmem:[#allocation8 + $0x60] sm:$0xff]
    %v231 = vld [vmem:[#allocation8 + $0x68] sm:$0xff]
    %v232 = vld [vmem:[#allocation8 + $0x70] sm:$0xff]
    %v233 = vld [vmem:[#allocation8 + $0x78] sm:$0xff]
    %v234 = vld [vmem:[#allocation10 + $0x2] sm:$0x1]
    %v235 = vperm.slane %v234, 0
    %236 = vmatpush.msra.mxu0 %v233
    %237 = vmatpush.msra.mxu0 %v232
    %238 = vmatpush.msra.mxu0 %v231
    %239 = vmatpush.msra.mxu0 %v230
    %240 = vmatpush.msra.mxu0 %v229
    %241 = vmatpush.msra.mxu0 %v228
    %242 = vmatpush.msra.mxu0 %v227
    %243 = vmatpush.msra.mxu0 %v226
    %244 = vmatpush.msra.mxu0 %v225
    %245 = vmatpush.msra.mxu0 %v224
    %246 = vmatpush.msra.mxu0 %v223
    %247 = vmatpush.msra.mxu0 %v222
    %248 = vmatpush.msra.mxu0 %v221
    %249 = vmatpush.msra.mxu0 %v220
    %250 = vmatpush.msra.mxu0 %v219
    %251 = vmatpush.msra.mxu0 %v218
    %252 = vmatmul.f32.gmra.mxu0 %v216
    %v253 = vpop.f32.mrf.mxu0
    %v254 = vadd.f32 %v235, %v253
    %255 = vmatmul.f32.gmra.mxu0 %v217
    %v256 = vpop.f32.mrf.mxu0
    %v257 = vadd.f32 %v235, %v256
    %258 = vdwg.mxu0
    %259 = vst [vmem:[#allocation11] sm:$0xff] %v254
    %260 = vst [vmem:[#allocation11 + $0x8] sm:$0xff] %v257
    // Predicated region
    $region42: #{tpu_custom_call.1} parent=1 // pred_check
      _
    $region43: #{tpu_custom_call.1} parent=1 // pred_check_branch
      %262 = sbr.rel (0) target = $region45
    $region44: #{tpu_custom_call.1} parent=1 // pred_region
      %264 = vsyncadd [#allocation4], 0
      %s265 = sshll.u32 [#allocation11], 4
      %s266 = int_to_ptr.vmem [resolvable:$true] %s265
      %s267 = sshll.u32 %s5, 4
      %s268 = int_to_ptr.hbm [resolvable:$true] %s267
      %273 = dma.vmem_to_hbm [thread:$0]  %s266, 256, %s268, [#allocation4], 128, 128, 8
    $region45: #{tpu_custom_call.1} parent=1 // pred_fallthru
      _
    // Predicated region
    $region46: #{tpu_custom_call.1} parent=1 // pred_check
      _
    $region47: #{tpu_custom_call.1} parent=1 // pred_check_branch
      %275 = sbr.rel (0) target = $region49
    $region48: #{tpu_custom_call.1} parent=1 // pred_region
      %277 = dma.done [#allocation4], 256
    $region49: #{tpu_custom_call.1} parent=1 // pred_fallthru
      _
    %278 = vsyncpa [#allocation3], 1
    %279 = vsyncpa [#allocation6], 1
    %280 = vsyncpa [#allocation9], 1
    %281 = vsyncpa [#allocation4], 1

</llo_original>
